<compile_context>
chip_gen: v5e
topology: v5e:2x2
jax: 0.10.0
libtpu: 0.0.40
codegen_flags: <defaults>
</compile_context>

<pallas_src>
import math

import jax
import jax.numpy as jnp
from jax.experimental import pallas as pl
from jax.experimental.pallas import tpu as pltpu

EMBEDDING_DIM = 32
MODEL_DIM = 32
_NEG_MASK = -1e30  # finite "−inf": softmax-equivalent, NaN-free, padding-safe


def _round_up(x, m):
    return ((x + m - 1) // m) * m


def bahdanau_kernel(q_ref, k_ref, mb_ref, wa_ref, ua_ref, b_ref, va_ref,
                    out_ref, wq_sc, m_sc, l_sc, acc_sc):
    s_idx = pl.program_id(1)
    TB, TS, D2 = k_ref.shape
    M = ua_ref.shape[1]

    @pl.when(s_idx == 0)
    def _init():
        # Wa(q) + (ba + bu), computed once per batch tile (biases folded; the Va
        # bias is dropped entirely - it cannot affect the softmax output).
        wq_sc[...] = (jnp.dot(q_ref[...], wa_ref[...],
                              preferred_element_type=jnp.float32) + b_ref[...])
        m_sc[...] = jnp.full_like(m_sc, jnp.finfo(jnp.float32).min)
        l_sc[...] = jnp.zeros_like(l_sc)
        acc_sc[...] = jnp.zeros_like(acc_sc)

    keys = k_ref[...]                                   # (TB, TS, D2)

    # Ua(keys): single MXU matmul over the flattened (TB*TS, D2) tile.
    uk = jnp.dot(keys.reshape(TB * TS, D2), ua_ref[...],
                 preferred_element_type=jnp.float32).reshape(TB, TS, M)

    # tanh(Wa(q)[:,None,:] + Ua(keys))  (EUP tanh, VPU add)
    h = jnp.tanh(wq_sc[...][:, None, :] + uk)           # (TB, TS, M)

    # Va(h) (lane-reduce over M) + additive key-padding mask bias.
    scores = jnp.sum(h * va_ref[...].reshape(1, 1, M), axis=-1) + mb_ref[...]

    # Online softmax update over the key-sequence axis.
    m_new = jnp.maximum(m_sc[...], jnp.max(scores, axis=-1, keepdims=True))
    alpha = jnp.exp(m_sc[...] - m_new)                  # (TB, 1)
    p = jnp.exp(scores - m_new)                         # (TB, TS)
    l_sc[...] = alpha * l_sc[...] + jnp.sum(p, axis=-1, keepdims=True)
    ctx_part = jnp.sum(p[:, :, None] * keys.astype(jnp.float32), axis=1)  # (TB, D2)
    acc_sc[...] = alpha * acc_sc[...] + ctx_part
    m_sc[...] = m_new

    @pl.when(s_idx == pl.num_programs(1) - 1)
    def _finalize():
        l = l_sc[...]
        # EUP approx reciprocal + one Newton step (TB x 1 elements -> negligible
        # VPU cost) recovers full f32 accuracy while keeping the divide off the VPU.
        r = pl.reciprocal(l, approx=True)
        r = r * (2.0 - l * r)
        out_ref[...] = (acc_sc[...] * r).astype(out_ref.dtype)


def bahdanau_attention(query, keys, key_padding_mask, params, *, tb=128, ts=128):
    """query (B,E) f32, keys (B,S,2E) f32, key_padding_mask (B,S) bool -> (B,1,2E) f32."""
    B, S, D2 = keys.shape
    E = query.shape[1]
    M = params["Wa"].shape[1]

    # Tile sizes: multiples of 8, conservative enough that keys-tile double
    # buffering + (TB,TS,M) intermediates stay well under v7x's 64 MiB VMEM.
    TB = min(tb, _round_up(B, 8))
    TS = min(ts, _round_up(S, 8))
    Bp = _round_up(B, TB)
    Sp = _round_up(S, TS)

    # Additive mask bias precomputed on the host (no cmp+select in the kernel).
    mask_bias = jnp.where(key_padding_mask, _NEG_MASK, 0.0).astype(jnp.float32)

    if Bp != B:
        query = jnp.pad(query, ((0, Bp - B), (0, 0)))
    if Bp != B or Sp != S:
        keys = jnp.pad(keys, ((0, Bp - B), (0, Sp - S), (0, 0)))
        mask_bias = jnp.pad(mask_bias, ((0, Bp - B), (0, Sp - S)),
                            constant_values=_NEG_MASK)

    bias_comb = (params["ba"] + params["bu"]).astype(jnp.float32)  # folded bias (1, M)

    grid = (Bp // TB, Sp // TS)
    out = pl.pallas_call(
        bahdanau_kernel,
        out_shape=jax.ShapeDtypeStruct((Bp, D2), jnp.float32),
        grid_spec=pltpu.PrefetchScalarGridSpec(
            num_scalar_prefetch=0,
            grid=grid,
            in_specs=[
                pl.BlockSpec((TB, E), lambda b, s: (b, 0)),        # query tile
                pl.BlockSpec((TB, TS, D2), lambda b, s: (b, s, 0)),  # keys tile
                pl.BlockSpec((TB, TS), lambda b, s: (b, s)),       # mask bias tile
                pl.BlockSpec((E, M), lambda b, s: (0, 0)),         # Wa (resident)
                pl.BlockSpec((D2, M), lambda b, s: (0, 0)),        # Ua (resident)
                pl.BlockSpec((1, M), lambda b, s: (0, 0)),         # ba+bu (resident)
                pl.BlockSpec((1, M), lambda b, s: (0, 0)),         # Va (resident)
            ],
            out_specs=pl.BlockSpec((TB, D2), lambda b, s: (b, 0)),  # lane-dense out
            scratch_shapes=[
                pltpu.VMEM((TB, M), jnp.float32),   # cached Wa(q)+bias
                pltpu.VMEM((TB, 1), jnp.float32),   # running max
                pltpu.VMEM((TB, 1), jnp.float32),   # running sum
                pltpu.VMEM((TB, D2), jnp.float32),  # context accumulator
            ],
        ),
        compiler_params=pltpu.CompilerParams(
            dimension_semantics=("parallel", "arbitrary"),
            vmem_limit_bytes=48 * 1024 * 1024,
        ),
    )(query, keys, mask_bias,
      params["Wa"], params["Ua"], bias_comb, params["Va"])

    return out[:B, None, :]  # (B, 1, 2E); reshape done host-side


def _xavier_uniform(key, fan_in, fan_out, shape):
    bound = math.sqrt(6.0 / (fan_in + fan_out))
    return jax.random.uniform(key, shape, jnp.float32, -bound, bound)


def init_params(key):
    k1, k2, k3 = jax.random.split(key, 3)
    # Stored as (in, out); PyTorch Linear weight is (out, in) -> this is W.T.
    Wa = _xavier_uniform(k1, EMBEDDING_DIM, MODEL_DIM, (EMBEDDING_DIM, MODEL_DIM))
    Ua = _xavier_uniform(k2, 2 * EMBEDDING_DIM, MODEL_DIM, (2 * EMBEDDING_DIM, MODEL_DIM))
    Va = _xavier_uniform(k3, MODEL_DIM, 1, (1, MODEL_DIM))      # kept as row vector
    return {
        "Wa": Wa, "ba": jnp.zeros((1, MODEL_DIM), jnp.float32),
        "Ua": Ua, "bu": jnp.zeros((1, MODEL_DIM), jnp.float32),
        "Va": Va, "bv": jnp.zeros((1, 1), jnp.float32),
    }


def _reference(query, keys, key_padding_mask, p):
    wq = query @ p["Wa"] + p["ba"]                       # (B, M)
    uk = keys @ p["Ua"] + p["bu"]                        # (B, S, M)
    h = jnp.tanh(wq[:, None, :] + uk)
    scores = jnp.einsum("bsm,m->bs", h, p["Va"][0]) + p["bv"][0, 0]
    scores = jnp.where(key_padding_mask, -jnp.inf, scores)
    attn = jax.nn.softmax(scores, axis=-1)
    return jnp.einsum("bs,bsd->bd", attn, keys)[:, None, :]


if __name__ == "__main__":
    B, S = 2, 8
    key = jax.random.PRNGKey(0)
    kq, kk, kp = jax.random.split(key, 3)

    query = jax.random.normal(kq, (B, EMBEDDING_DIM), jnp.float32)
    keys = jax.random.normal(kk, (B, S, 2 * EMBEDDING_DIM), jnp.float32)
    lengths = jnp.array([8, 5], dtype=jnp.int32)
    key_padding_mask = jnp.arange(S)[None, :] >= lengths[:, None]   # (B, S) bool

    params = init_params(kp)

    out = bahdanau_attention(query, keys, key_padding_mask, params)
    out = jax.block_until_ready(out)

    ref = _reference(query, keys, key_padding_mask, params)
    assert out.shape == (B, 1, 2 * EMBEDDING_DIM)
    assert jnp.allclose(out, ref, atol=1e-5, rtol=1e-5)

    print("KERNEL_OK")
</pallas_src>

<mosaic_0001>
module attributes {stable_mosaic.version = 11 : i64} {
  func.func @bahdanau_kernel(%arg0: i32, %arg1: i32, %arg2: memref<8x32xf32, #tpu.memory_space<vmem>>, %arg3: memref<8x8x64xf32, #tpu.memory_space<vmem>>, %arg4: memref<8x8xf32, #tpu.memory_space<vmem>>, %arg5: memref<32x32xf32, #tpu.memory_space<vmem>>, %arg6: memref<64x32xf32, #tpu.memory_space<vmem>>, %arg7: memref<1x32xf32, #tpu.memory_space<vmem>>, %arg8: memref<1x32xf32, #tpu.memory_space<vmem>>, %arg9: memref<8x64xf32, #tpu.memory_space<vmem>>, %arg10: memref<8x32xf32, #tpu.memory_space<vmem>>, %arg11: memref<8x1xf32, #tpu.memory_space<vmem>>, %arg12: memref<8x1xf32, #tpu.memory_space<vmem>>, %arg13: memref<8x64xf32, #tpu.memory_space<vmem>>) attributes {dimension_semantics = [#tpu.dimension_semantics<parallel>, #tpu.dimension_semantics<arbitrary>], iteration_bounds = array<i64: 1, 1>, scalar_prefetch = 0 : i64, scratch_operands = 4 : i64, tpu.core_type = #tpu.core_type<tc>, window_params = [{transform_indices = @transform_0, window_bounds = array<i64: 8, 32>}, {transform_indices = @transform_1, window_bounds = array<i64: 8, 8, 64>}, {transform_indices = @transform_2, window_bounds = array<i64: 8, 8>}, {pipeline_mode = #tpu.pipeline_mode<synchronous>, transform_indices = @transform_3, window_bounds = array<i64: 32, 32>}, {pipeline_mode = #tpu.pipeline_mode<synchronous>, transform_indices = @transform_4, window_bounds = array<i64: 64, 32>}, {pipeline_mode = #tpu.pipeline_mode<synchronous>, transform_indices = @transform_5, window_bounds = array<i64: 1, 32>}, {pipeline_mode = #tpu.pipeline_mode<synchronous>, transform_indices = @transform_6, window_bounds = array<i64: 1, 32>}, {transform_indices = @transform_7, window_bounds = array<i64: 8, 64>}]} {
    %c0_i32 = arith.constant 0 : i32
    %0 = arith.cmpi eq, %arg1, %c0_i32 : i32
    %1 = arith.extui %0 : i1 to i32
    %c0_i32_0 = arith.constant 0 : i32
    %2 = arith.cmpi ne, %1, %c0_i32_0 : i32
    scf.if %2 {
      %c0_31 = arith.constant 0 : index
      %c0_32 = arith.constant 0 : index
      %49 = vector.load %arg2[%c0_31, %c0_32] : memref<8x32xf32, #tpu.memory_space<vmem>>, vector<8x32xf32>
      %c0_33 = arith.constant 0 : index
      %c0_34 = arith.constant 0 : index
      %50 = vector.load %arg5[%c0_33, %c0_34] : memref<32x32xf32, #tpu.memory_space<vmem>>, vector<32x32xf32>
      %cst_35 = arith.constant dense<0.000000e+00> : vector<8x32xf32>
      %51 = tpu.matmul %49, %50, %cst_35 {dimension_numbers = #tpu.dot_dimension_numbers<[1], [0], [0], [1], [0, 0, 1, 1], [], []>} : vector<8x32xf32>, vector<32x32xf32>, vector<8x32xf32> -> vector<8x32xf32>
      %c0_36 = arith.constant 0 : index
      %c0_37 = arith.constant 0 : index
      %52 = vector.load %arg7[%c0_36, %c0_37] : memref<1x32xf32, #tpu.memory_space<vmem>>, vector<1x32xf32>
      %53 = vector.broadcast %52 : vector<1x32xf32> to vector<8x32xf32>
      %54 = arith.addf %51, %53 : vector<8x32xf32>
      %c0_38 = arith.constant 0 : index
      %c0_39 = arith.constant 0 : index
      %55 = vector.load %arg10[%c0_38, %c0_39] : memref<8x32xf32, #tpu.memory_space<vmem>>, vector<8x32xf32>
      tpu.vector_store %arg10[%c0_38, %c0_39], %54 {strides = array<i32>} : memref<8x32xf32, #tpu.memory_space<vmem>>, vector<8x32xf32>,
      %cst_40 = arith.constant -3.40282347E+38 : f32
      %56 = vector.broadcast %cst_40 : f32 to vector<8x1xf32>
      %c0_41 = arith.constant 0 : index
      %c0_42 = arith.constant 0 : index
      %57 = vector.load %arg11[%c0_41, %c0_42] : memref<8x1xf32, #tpu.memory_space<vmem>>, vector<8x1xf32>
      tpu.vector_store %arg11[%c0_41, %c0_42], %56 {strides = array<i32>} : memref<8x1xf32, #tpu.memory_space<vmem>>, vector<8x1xf32>,
      %cst_43 = arith.constant 0.000000e+00 : f32
      %58 = vector.broadcast %cst_43 : f32 to vector<8x1xf32>
      %c0_44 = arith.constant 0 : index
      %c0_45 = arith.constant 0 : index
      %59 = vector.load %arg12[%c0_44, %c0_45] : memref<8x1xf32, #tpu.memory_space<vmem>>, vector<8x1xf32>
      tpu.vector_store %arg12[%c0_44, %c0_45], %58 {strides = array<i32>} : memref<8x1xf32, #tpu.memory_space<vmem>>, vector<8x1xf32>,
      %cst_46 = arith.constant 0.000000e+00 : f32
      %60 = vector.broadcast %cst_46 : f32 to vector<8x64xf32>
      %c0_47 = arith.constant 0 : index
      %c0_48 = arith.constant 0 : index
      %61 = vector.load %arg13[%c0_47, %c0_48] : memref<8x64xf32, #tpu.memory_space<vmem>>, vector<8x64xf32>
      tpu.vector_store %arg13[%c0_47, %c0_48], %60 {strides = array<i32>} : memref<8x64xf32, #tpu.memory_space<vmem>>, vector<8x64xf32>,
    } else {
    }
    %c0 = arith.constant 0 : index
    %c0_1 = arith.constant 0 : index
    %c0_2 = arith.constant 0 : index
    %3 = vector.load %arg3[%c0, %c0_1, %c0_2] : memref<8x8x64xf32, #tpu.memory_space<vmem>>, vector<8x8x64xf32>
    %4 = vector.shape_cast %3 : vector<8x8x64xf32> to vector<64x64xf32>
    %c0_3 = arith.constant 0 : index
    %c0_4 = arith.constant 0 : index
    %5 = vector.load %arg6[%c0_3, %c0_4] : memref<64x32xf32, #tpu.memory_space<vmem>>, vector<64x32xf32>
    %cst = arith.constant dense<0.000000e+00> : vector<64x32xf32>
    %6 = tpu.matmul %4, %5, %cst {dimension_numbers = #tpu.dot_dimension_numbers<[1], [0], [0], [1], [0, 0, 1, 1], [], []>} : vector<64x64xf32>, vector<64x32xf32>, vector<64x32xf32> -> vector<64x32xf32>
    %7 = vector.shape_cast %6 : vector<64x32xf32> to vector<8x8x32xf32>
    %c0_5 = arith.constant 0 : index
    %c0_6 = arith.constant 0 : index
    %8 = vector.load %arg10[%c0_5, %c0_6] : memref<8x32xf32, #tpu.memory_space<vmem>>, vector<8x32xf32>
    %9 = vector.shape_cast %8 : vector<8x32xf32> to vector<8x1x32xf32>
    %10 = vector.broadcast %9 : vector<8x1x32xf32> to vector<8x8x32xf32>
    %11 = arith.addf %10, %7 : vector<8x8x32xf32>
    %12 = math.tanh %11 : vector<8x8x32xf32>
    %c0_7 = arith.constant 0 : index
    %c0_8 = arith.constant 0 : index
    %13 = vector.load %arg8[%c0_7, %c0_8] : memref<1x32xf32, #tpu.memory_space<vmem>>, vector<1x32xf32>
    %14 = vector.shape_cast %13 : vector<1x32xf32> to vector<1x1x32xf32>
    %15 = vector.broadcast %14 : vector<1x1x32xf32> to vector<8x8x32xf32>
    %16 = arith.mulf %12, %15 : vector<8x8x32xf32>
    %cst_9 = arith.constant dense<0.000000e+00> : vector<8x8xf32>
    %17 = vector.multi_reduction <add>, %16, %cst_9 [2] : vector<8x8x32xf32> to vector<8x8xf32>
    %c0_10 = arith.constant 0 : index
    %c0_11 = arith.constant 0 : index
    %18 = vector.load %arg4[%c0_10, %c0_11] : memref<8x8xf32, #tpu.memory_space<vmem>>, vector<8x8xf32>
    %19 = arith.addf %17, %18 : vector<8x8xf32>
    %c0_12 = arith.constant 0 : index
    %c0_13 = arith.constant 0 : index
    %20 = vector.load %arg11[%c0_12, %c0_13] : memref<8x1xf32, #tpu.memory_space<vmem>>, vector<8x1xf32>
    %cst_14 = arith.constant dense<0xFF800000> : vector<8xf32>
    %21 = vector.multi_reduction <maximumf>, %19, %cst_14 [1] : vector<8x8xf32> to vector<8xf32>
    %22 = vector.shape_cast %21 : vector<8xf32> to vector<8x1xf32>
    %23 = arith.maximumf %20, %22 : vector<8x1xf32>
    %c0_15 = arith.constant 0 : index
    %c0_16 = arith.constant 0 : index
    %24 = vector.load %arg11[%c0_15, %c0_16] : memref<8x1xf32, #tpu.memory_space<vmem>>, vector<8x1xf32>
    %25 = arith.subf %24, %23 : vector<8x1xf32>
    %26 = math.exp %25 : vector<8x1xf32>
    %27 = vector.broadcast %23 : vector<8x1xf32> to vector<8x8xf32>
    %28 = arith.subf %19, %27 : vector<8x8xf32>
    %29 = math.exp %28 : vector<8x8xf32>
    %c0_17 = arith.constant 0 : index
    %c0_18 = arith.constant 0 : index
    %30 = vector.load %arg12[%c0_17, %c0_18] : memref<8x1xf32, #tpu.memory_space<vmem>>, vector<8x1xf32>
    %31 = arith.mulf %26, %30 : vector<8x1xf32>
    %cst_19 = arith.constant dense<0.000000e+00> : vector<8xf32>
    %32 = vector.multi_reduction <add>, %29, %cst_19 [1] : vector<8x8xf32> to vector<8xf32>
    %33 = vector.shape_cast %32 : vector<8xf32> to vector<8x1xf32>
    %34 = arith.addf %31, %33 : vector<8x1xf32>
    %c0_20 = arith.constant 0 : index
    %c0_21 = arith.constant 0 : index
    %35 = vector.load %arg12[%c0_20, %c0_21] : memref<8x1xf32, #tpu.memory_space<vmem>>, vector<8x1xf32>
    tpu.vector_store %arg12[%c0_20, %c0_21], %34 {strides = array<i32>} : memref<8x1xf32, #tpu.memory_space<vmem>>, vector<8x1xf32>,
    %36 = vector.shape_cast %29 : vector<8x8xf32> to vector<8x8x1xf32>
    %37 = vector.broadcast %36 : vector<8x8x1xf32> to vector<8x8x64xf32>
    %38 = arith.mulf %37, %3 : vector<8x8x64xf32>
    %cst_22 = arith.constant dense<0.000000e+00> : vector<8x64xf32>
    %39 = vector.multi_reduction <add>, %38, %cst_22 [1] : vector<8x8x64xf32> to vector<8x64xf32>
    %c0_23 = arith.constant 0 : index
    %c0_24 = arith.constant 0 : index
    %40 = vector.load %arg13[%c0_23, %c0_24] : memref<8x64xf32, #tpu.memory_space<vmem>>, vector<8x64xf32>
    %41 = vector.broadcast %26 : vector<8x1xf32> to vector<8x64xf32>
    %42 = arith.mulf %41, %40 : vector<8x64xf32>
    %43 = arith.addf %42, %39 : vector<8x64xf32>
    %c0_25 = arith.constant 0 : index
    %c0_26 = arith.constant 0 : index
    %44 = vector.load %arg13[%c0_25, %c0_26] : memref<8x64xf32, #tpu.memory_space<vmem>>, vector<8x64xf32>
    tpu.vector_store %arg13[%c0_25, %c0_26], %43 {strides = array<i32>} : memref<8x64xf32, #tpu.memory_space<vmem>>, vector<8x64xf32>,
    %c0_27 = arith.constant 0 : index
    %c0_28 = arith.constant 0 : index
    %45 = vector.load %arg11[%c0_27, %c0_28] : memref<8x1xf32, #tpu.memory_space<vmem>>, vector<8x1xf32>
    tpu.vector_store %arg11[%c0_27, %c0_28], %23 {strides = array<i32>} : memref<8x1xf32, #tpu.memory_space<vmem>>, vector<8x1xf32>,
    %c0_i32_29 = arith.constant 0 : i32
    %46 = arith.cmpi eq, %arg1, %c0_i32_29 : i32
    %47 = arith.extui %46 : i1 to i32
    %c0_i32_30 = arith.constant 0 : i32
    %48 = arith.cmpi ne, %47, %c0_i32_30 : i32
    scf.if %48 {
      %c0_31 = arith.constant 0 : index
      %c0_32 = arith.constant 0 : index
      %49 = vector.load %arg12[%c0_31, %c0_32] : memref<8x1xf32, #tpu.memory_space<vmem>>, vector<8x1xf32>
      %50 = tpu.reciprocal %49 {approx = true} : vector<8x1xf32> -> vector<8x1xf32>
      %51 = arith.mulf %49, %50 : vector<8x1xf32>
      %cst_33 = arith.constant 2.000000e+00 : f32
      %52 = vector.broadcast %cst_33 : f32 to vector<8x1xf32>
      %53 = arith.subf %52, %51 : vector<8x1xf32>
      %54 = arith.mulf %50, %53 : vector<8x1xf32>
      %c0_34 = arith.constant 0 : index
      %c0_35 = arith.constant 0 : index
      %55 = vector.load %arg13[%c0_34, %c0_35] : memref<8x64xf32, #tpu.memory_space<vmem>>, vector<8x64xf32>
      %56 = vector.broadcast %54 : vector<8x1xf32> to vector<8x64xf32>
      %57 = arith.mulf %55, %56 : vector<8x64xf32>
      %c0_36 = arith.constant 0 : index
      %c0_37 = arith.constant 0 : index
      %58 = vector.load %arg9[%c0_36, %c0_37] : memref<8x64xf32, #tpu.memory_space<vmem>>, vector<8x64xf32>
      tpu.vector_store %arg9[%c0_36, %c0_37], %57 {strides = array<i32>} : memref<8x64xf32, #tpu.memory_space<vmem>>, vector<8x64xf32>,
    } else {
    }
    return
  }
  func.func @transform_0(%arg0: i32, %arg1: i32) -> (i32, i32) {
    %c0_i32 = arith.constant 0 : i32
    %c0_i32_0 = arith.constant 0 : i32
    return %arg0, %c0_i32 : i32, i32
  }
  func.func @transform_1(%arg0: i32, %arg1: i32) -> (i32, i32, i32) {
    %c0_i32 = arith.constant 0 : i32
    %c0_i32_0 = arith.constant 0 : i32
    return %arg0, %arg1, %c0_i32 : i32, i32, i32
  }
  func.func @transform_2(%arg0: i32, %arg1: i32) -> (i32, i32) {
    %c0_i32 = arith.constant 0 : i32
    return %arg0, %arg1 : i32, i32
  }
  func.func @transform_3(%arg0: i32, %arg1: i32) -> (i32, i32) {
    %c0_i32 = arith.constant 0 : i32
    %c0_i32_0 = arith.constant 0 : i32
    %c0_i32_1 = arith.constant 0 : i32
    return %c0_i32, %c0_i32_0 : i32, i32
  }
  func.func @transform_4(%arg0: i32, %arg1: i32) -> (i32, i32) {
    %c0_i32 = arith.constant 0 : i32
    %c0_i32_0 = arith.constant 0 : i32
    %c0_i32_1 = arith.constant 0 : i32
    return %c0_i32, %c0_i32_0 : i32, i32
  }
  func.func @transform_5(%arg0: i32, %arg1: i32) -> (i32, i32) {
    %c0_i32 = arith.constant 0 : i32
    %c0_i32_0 = arith.constant 0 : i32
    %c0_i32_1 = arith.constant 0 : i32
    return %c0_i32, %c0_i32_0 : i32, i32
  }
  func.func @transform_6(%arg0: i32, %arg1: i32) -> (i32, i32) {
    %c0_i32 = arith.constant 0 : i32
    %c0_i32_0 = arith.constant 0 : i32
    %c0_i32_1 = arith.constant 0 : i32
    return %c0_i32, %c0_i32_0 : i32, i32
  }
  func.func @transform_7(%arg0: i32, %arg1: i32) -> (i32, i32) {
    %c0_i32 = arith.constant 0 : i32
    %c0_i32_0 = arith.constant 0 : i32
    return %arg0, %c0_i32 : i32, i32
  }
}

</mosaic_0001>

<llo_original>
// kernel: tpu_custom_call.1
$region0: #{tpu_custom_call.1}
  #allocation0 [shape = 'u32[]', space=smem, size = 0x4, offset = 0x4, fixed_abs, tag = 'smem constant byte address 0x4 - core index']
  #allocation1 [shape = 'u32[72,128]{1,0:T(1,128)}', space=vmem, size = 0x9000, scoped, tag = 'internal scratch']
  #allocation2 [shape = 'f32[8,32]{1,0:T(8,128)}', space=vmem, size = 0x1000, scoped, tag = 'scratch operand']
  #allocation3 [shape = 'f32[8,1]{1,0:T(8,128)}', space=vmem, size = 0x1000, scoped, tag = 'scratch operand']
  #allocation4 [shape = 'f32[8,1]{1,0:T(8,128)}', space=vmem, size = 0x1000, scoped, tag = 'scratch operand']
  #allocation5 [shape = 'f32[8,64]{1,0:T(8,128)}', space=vmem, size = 0x1000, scoped, tag = 'scratch operand']
  %s0 = inlined_call_operand.hbm [shape: f32[8,32], index: 0, kind: input, shape index: {}]
  %s1 = inlined_call_operand.vmem [shape: f32[8,8,64], index: 1, kind: input, shape index: {}]
  %s2 = inlined_call_operand.hbm [shape: f32[8,8], index: 2, kind: input, shape index: {}]
  %s3 = inlined_call_operand.vmem [shape: f32[32,32], index: 3, kind: input, shape index: {}]
  %s4 = inlined_call_operand.vmem [shape: f32[64,32], index: 4, kind: input, shape index: {}]
  %s5 = inlined_call_operand.vmem [shape: f32[1,32], index: 5, kind: input, shape index: {}]
  %s6 = inlined_call_operand.vmem [shape: f32[1,32], index: 6, kind: input, shape index: {}]
  %s7 = inlined_call_operand.hbm [shape: f32[8,64], index: 7, kind: output, shape index: {}]
  %s8 = sld [smem:[#allocation0]]
  $region54: #{tpu_custom_call.1} parent=0
    _
  %s10 = ssub.s32 1, %s8
  %s11 = scalar_select 0, %s10, %s8
  $region1: #{tpu_custom_call.1} parent=0
    #allocation6 [shape = 'u8[4096]{0}', space=vmem, size = 0x1000, scoped, tag = 'input window, operand 0, single buffered']
    #allocation7 [shape = 's32[1]{0}', space=sflag, size = 0x4, scoped, tag = 'scoped memory for tpu_custom_call.1']
    #allocation8 [shape = 's32[1]{0}', space=sflag, size = 0x4, scoped, tag = 'scoped memory for tpu_custom_call.1']
    #allocation9 [shape = 'u8[4096]{0}', space=vmem, size = 0x1000, scoped, tag = 'input window, operand 2, single buffered']
    #allocation10 [shape = 's32[1]{0}', space=sflag, size = 0x4, scoped, tag = 'scoped memory for tpu_custom_call.1']
    #allocation11 [shape = 'u8[4096]{0}', space=vmem, size = 0x1000, scoped, tag = 'output window, operand 0, single buffered']
    %12 = vsyncpa [#allocation7], 0
    %13 = vsyncpa [#allocation10], 0
    %14 = vsyncpa [#allocation8], 0
    // Predicated region
    $region2: #{tpu_custom_call.1} parent=1 // pred_check
      _
    $region3: #{tpu_custom_call.1} parent=1 // pred_check_branch
      %16 = sbr.rel (0) target = $region5
    $region4: #{tpu_custom_call.1} parent=1 // pred_region
      %18 = vsyncadd [#allocation7], 0
      %s20 = sshll.u32 %s0, 4
      %s21 = int_to_ptr.hbm [resolvable:$true] %s20
      %s22 = sshll.u32 [#allocation6], 4
      %s23 = int_to_ptr.vmem [resolvable:$true] %s22
      %25 = dma.hbm_to_vmem [thread:$0]  %s21, 128, %s23, [#allocation7]
    $region5: #{tpu_custom_call.1} parent=1 // pred_fallthru
      _
    // Predicated region
    $region6: #{tpu_custom_call.1} parent=1 // pred_check
      _
    $region7: #{tpu_custom_call.1} parent=1 // pred_check_branch
      %27 = sbr.rel (0) target = $region9
    $region8: #{tpu_custom_call.1} parent=1 // pred_region
      _
    $region9: #{tpu_custom_call.1} parent=1 // pred_fallthru
      _
    // Predicated region
    $region10: #{tpu_custom_call.1} parent=1 // pred_check
      _
    $region11: #{tpu_custom_call.1} parent=1 // pred_check_branch
      %29 = sbr.rel (0) target = $region13
    $region12: #{tpu_custom_call.1} parent=1 // pred_region
      %31 = vsyncadd [#allocation10], 0
      %s33 = sshll.u32 %s2, 4
      %s34 = int_to_ptr.hbm [resolvable:$true] %s33
      %s35 = sshll.u32 [#allocation9], 4
      %s36 = int_to_ptr.vmem [resolvable:$true] %s35
      %38 = dma.hbm_to_vmem [thread:$0]  %s34, 128, %s36, [#allocation10]
    $region13: #{tpu_custom_call.1} parent=1 // pred_fallthru
      _
    // Predicated region
    $region14: #{tpu_custom_call.1} parent=1 // pred_check
      _
    $region15: #{tpu_custom_call.1} parent=1 // pred_check_branch
      %40 = sbr.rel (0) target = $region17
    $region16: #{tpu_custom_call.1} parent=1 // pred_region
      _
    $region17: #{tpu_custom_call.1} parent=1 // pred_fallthru
      _
    // Predicated region
    $region18: #{tpu_custom_call.1} parent=1 // pred_check
      _
    $region19: #{tpu_custom_call.1} parent=1 // pred_check_branch
      %42 = sbr.rel (0) target = $region21
    $region20: #{tpu_custom_call.1} parent=1 // pred_region
      _
    $region21: #{tpu_custom_call.1} parent=1 // pred_fallthru
      _
    // Predicated region
    $region22: #{tpu_custom_call.1} parent=1 // pred_check
      _
    $region23: #{tpu_custom_call.1} parent=1 // pred_check_branch
      %44 = sbr.rel (0) target = $region25
    $region24: #{tpu_custom_call.1} parent=1 // pred_region
      _
    $region25: #{tpu_custom_call.1} parent=1 // pred_fallthru
      _
    // Predicated region
    $region26: #{tpu_custom_call.1} parent=1 // pred_check
      _
    $region27: #{tpu_custom_call.1} parent=1 // pred_check_branch
      %46 = sbr.rel (0) target = $region29
    $region28: #{tpu_custom_call.1} parent=1 // pred_region
      _
    $region29: #{tpu_custom_call.1} parent=1 // pred_fallthru
      _
    // Predicated region
    $region30: #{tpu_custom_call.1} parent=1 // pred_check
      _
    $region31: #{tpu_custom_call.1} parent=1 // pred_check_branch
      %48 = sbr.rel (0) target = $region33
    $region32: #{tpu_custom_call.1} parent=1 // pred_region
      %50 = dma.done [#allocation7], 128
    $region33: #{tpu_custom_call.1} parent=1 // pred_fallthru
      _
    // Predicated region
    $region34: #{tpu_custom_call.1} parent=1 // pred_check
      _
    $region35: #{tpu_custom_call.1} parent=1 // pred_check_branch
      %52 = sbr.rel (0) target = $region37
    $region36: #{tpu_custom_call.1} parent=1 // pred_region
      %54 = dma.done [#allocation10], 128
    $region37: #{tpu_custom_call.1} parent=1 // pred_fallthru
      _
    %p55 = scmp.eq.s32.totalorder 0, 0
    // Predicated region
    $region38: #{tpu_custom_call.1} parent=1 // pred_check
      %p56 = pneg %p55
    $region39: #{tpu_custom_call.1} parent=1 // pred_check_branch
      %58 = sbr.rel (%p56) target = $region41
    $region40: #{tpu_custom_call.1} parent=1 // pred_region
      %v59 = vld [vmem:[#allocation6] sm:$0xff]
      %v60 = vld [vmem:[%s3] sm:$0xff]
      %v61 = vld [vmem:[%s3 + $0x8] sm:$0xff]
      %v62 = vld [vmem:[%s3 + $0x10] sm:$0xff]
      %v63 = vld [vmem:[%s3 + $0x18] sm:$0xff]
      %v64 = vld [vmem:[%s5] sm:$0x1]
      %v66 = vperm.slane %v64, 0
      %vm68 = vcmask 261120
      %v70 = vsel %vm68, %v59, 0
      %72 = vmatpush.msra.mxu0 0.0
      %73 = vmatpush.msra.mxu0 0.0
      %74 = vmatpush.msra.mxu0 0.0
      %75 = vmatpush.msra.mxu0 0.0
      %76 = vmatpush.msra.mxu0 0.0
      %77 = vmatpush.msra.mxu0 0.0
      %78 = vmatpush.msra.mxu0 0.0
      %79 = vmatpush.msra.mxu0 0.0
      %80 = vmatpush.msra.mxu0 0.0
      %81 = vmatpush.msra.mxu0 0.0
      %82 = vmatpush.msra.mxu0 0.0
      %83 = vmatpush.msra.mxu0 0.0
      %84 = vmatpush.msra.mxu0 %v63
      %85 = vmatpush.msra.mxu0 %v62
      %86 = vmatpush.msra.mxu0 %v61
      %87 = vmatpush.msra.mxu0 %v60
      %88 = vmatmul.f32.gmra.mxu0 %v70
      %v89 = vpop.f32.mrf.mxu0
      %v90 = vadd.f32 %v66, %v89
      %91 = vdwg.mxu0
      %92 = vst.msk [vmem:[#allocation2] sm:$0xff] %vm68, %v90
      %vm93 = vcmask 7168
      %94 = vst.msk [vmem:[#allocation3] sm:$0xff] %vm93, -3.4028235e+38
      %95 = vst.msk [vmem:[#allocation4] sm:$0xff] %vm93, 0.0
      %vm96 = vcmask 523264
      %97 = vst.msk [vmem:[#allocation5] sm:$0xff] %vm96, 0.0
    $region41: #{tpu_custom_call.1} parent=1 // pred_fallthru
      _
    %v98 = vld [vmem:[%s1] sm:$0xff]
    %v99 = vld [vmem:[%s1 + $0x8] sm:$0xff]
    %v100 = vld [vmem:[%s1 + $0x10] sm:$0xff]
    %v101 = vld [vmem:[%s1 + $0x18] sm:$0xff]
    %v102 = vld [vmem:[%s1 + $0x20] sm:$0xff]
    %v103 = vld [vmem:[%s1 + $0x28] sm:$0xff]
    %v104 = vld [vmem:[%s1 + $0x30] sm:$0xff]
    %v105 = vld [vmem:[%s1 + $0x38] sm:$0xff]
    %v106 = vld [vmem:[%s4] sm:$0xff]
    %v107 = vld [vmem:[%s4 + $0x8] sm:$0xff]
    %v108 = vld [vmem:[%s4 + $0x10] sm:$0xff]
    %v109 = vld [vmem:[%s4 + $0x18] sm:$0xff]
    %v110 = vld [vmem:[%s4 + $0x20] sm:$0xff]
    %v111 = vld [vmem:[%s4 + $0x28] sm:$0xff]
    %v112 = vld [vmem:[%s4 + $0x30] sm:$0xff]
    %v113 = vld [vmem:[%s4 + $0x38] sm:$0xff]
    %vm114 = vcmask 523264
    %v116 = vsel %vm114, %v98, 0
    %v119 = vsel %vm114, %v99, 0
    %v122 = vsel %vm114, %v100, 0
    %v125 = vsel %vm114, %v101, 0
    %v128 = vsel %vm114, %v102, 0
    %v131 = vsel %vm114, %v103, 0
    %v134 = vsel %vm114, %v104, 0
    %v137 = vsel %vm114, %v105, 0
    %139 = vmatpush.msra.mxu0 0.0
    %140 = vmatpush.msra.mxu0 0.0
    %141 = vmatpush.msra.mxu0 0.0
    %142 = vmatpush.msra.mxu0 0.0
    %143 = vmatpush.msra.mxu0 0.0
    %144 = vmatpush.msra.mxu0 0.0
    %145 = vmatpush.msra.mxu0 0.0
    %146 = vmatpush.msra.mxu0 0.0
    %147 = vmatpush.msra.mxu0 %v113
    %148 = vmatpush.msra.mxu0 %v112
    %149 = vmatpush.msra.mxu0 %v111
    %150 = vmatpush.msra.mxu0 %v110
    %151 = vmatpush.msra.mxu0 %v109
    %152 = vmatpush.msra.mxu0 %v108
    %153 = vmatpush.msra.mxu0 %v107
    %154 = vmatpush.msra.mxu0 %v106
    %155 = vmatmul.f32.gmra.mxu0 %v116
    %v156 = vpop.f32.mrf.mxu0
    %v157 = vadd.f32 0.0, %v156
    %158 = vmatmul.f32.gmra.mxu0 %v119
    %v159 = vpop.f32.mrf.mxu0
    %v160 = vadd.f32 0.0, %v159
    %161 = vmatmul.f32.gmra.mxu0 %v122
    %v162 = vpop.f32.mrf.mxu0
    %v163 = vadd.f32 0.0, %v162
    %164 = vmatmul.f32.gmra.mxu0 %v125
    %v165 = vpop.f32.mrf.mxu0
    %v166 = vadd.f32 0.0, %v165
    %167 = vmatmul.f32.gmra.mxu0 %v128
    %v168 = vpop.f32.mrf.mxu0
    %v169 = vadd.f32 0.0, %v168
    %170 = vmatmul.f32.gmra.mxu0 %v131
    %v171 = vpop.f32.mrf.mxu0
    %v172 = vadd.f32 0.0, %v171
    %173 = vmatmul.f32.gmra.mxu0 %v134
    %v174 = vpop.f32.mrf.mxu0
    %v175 = vadd.f32 0.0, %v174
    %176 = vmatmul.f32.gmra.mxu0 %v137
    %v177 = vpop.f32.mrf.mxu0
    %v178 = vadd.f32 0.0, %v177
    %179 = vdwg.mxu0
    %v180 = vld [vmem:[#allocation2] sm:$0xff]
    %v182 = vrot.slane %v180, 1
    %v183 = vrot.slane %v180, 2
    %v184 = vrot.slane %v180, 3
    %v185 = vrot.slane %v180, 4
    %v186 = vrot.slane %v180, 5
    %v187 = vrot.slane %v180, 6
    %v188 = vrot.slane %v180, 7
    %v189 = vperm.slane %v180, 0
    %v190 = vperm.slane %v182, 0
    %v191 = vperm.slane %v183, 0
    %v192 = vperm.slane %v184, 0
    %v193 = vperm.slane %v185, 0
    %v194 = vperm.slane %v186, 0
    %v195 = vperm.slane %v187, 0
    %v196 = vperm.slane %v188, 0
    %v205 = vadd.f32 %v189, %v157
    %v206 = vadd.f32 %v190, %v160
    %v207 = vadd.f32 %v191, %v163
    %v208 = vadd.f32 %v192, %v166
    %v209 = vadd.f32 %v193, %v169
    %v210 = vadd.f32 %v194, %v172
    %v211 = vadd.f32 %v195, %v175
    %v212 = vadd.f32 %v196, %v178
    %v213 = vtanh.pop %v205
    %v214 = vtanh.pop %v206
    %v215 = vtanh.pop %v207
    %v216 = vtanh.pop %v208
    %v217 = vtanh.pop %v209
    %v218 = vtanh.pop %v210
    %v219 = vtanh.pop %v211
    %v220 = vtanh.pop %v212
    %v221 = vld [vmem:[%s6] sm:$0x1]
    %v223 = vperm.slane %v221, 0
    %v225 = vmul.f32 %v213, %v223
    %v226 = vmul.f32 %v214, %v223
    %v227 = vmul.f32 %v215, %v223
    %v228 = vmul.f32 %v216, %v223
    %v229 = vmul.f32 %v217, %v223
    %v230 = vmul.f32 %v218, %v223
    %v231 = vmul.f32 %v219, %v223
    %v232 = vmul.f32 %v220, %v223
    %vm233 = vcmask 261120
    %v234 = vsel %vm233, %v225, 0.0
    %235 = vadd.xlane.f32.xlu0 %v234
    %v236 = vpop.xlane.xlu0 %235
    %v237 = vsel %vm233, %v226, 0.0
    %238 = vadd.xlane.f32.xlu0 %v237
    %v239 = vpop.xlane.xlu0 %238
    %v240 = vsel %vm233, %v227, 0.0
    %241 = vadd.xlane.f32.xlu0 %v240
    %v242 = vpop.xlane.xlu0 %241
    %v243 = vsel %vm233, %v228, 0.0
    %244 = vadd.xlane.f32.xlu0 %v243
    %v245 = vpop.xlane.xlu0 %244
    %v246 = vsel %vm233, %v229, 0.0
    %247 = vadd.xlane.f32.xlu0 %v246
    %v248 = vpop.xlane.xlu0 %247
    %v249 = vsel %vm233, %v230, 0.0
    %250 = vadd.xlane.f32.xlu0 %v249
    %v251 = vpop.xlane.xlu0 %250
    %v252 = vsel %vm233, %v231, 0.0
    %253 = vadd.xlane.f32.xlu0 %v252
    %v254 = vpop.xlane.xlu0 %253
    %v255 = vsel %vm233, %v232, 0.0
    %256 = vadd.xlane.f32.xlu0 %v255
    %v257 = vpop.xlane.xlu0 %256
    %v258 = vld [vmem:[#allocation9] sm:$0xff]
    %v260 = vperm.slane %v258, 0
    %v261 = vlaneseq
    %v262 = vshrl.u32 %v261, 7
    %264 = vset.pattern.permute.xlu0 %v262
    %265 = vperm.xlu0 %264, %v260
    %v266 = vpop.permute.xlu0 %265
    %v267 = vperm.slane %v258, 1
    %v268 = vlaneseq
    %v269 = vshrl.u32 %v268, 7
    %271 = vset.pattern.permute.xlu0 %v269
    %272 = vperm.xlu0 %271, %v267
    %v273 = vpop.permute.xlu0 %272
    %v274 = vperm.slane %v258, 2
    %v275 = vlaneseq
    %v276 = vshrl.u32 %v275, 7
    %278 = vset.pattern.permute.xlu0 %v276
    %279 = vperm.xlu0 %278, %v274
    %v280 = vpop.permute.xlu0 %279
    %v281 = vperm.slane %v258, 3
    %v282 = vlaneseq
    %v283 = vshrl.u32 %v282, 7
    %285 = vset.pattern.permute.xlu0 %v283
    %286 = vperm.xlu0 %285, %v281
    %v287 = vpop.permute.xlu0 %286
    %v288 = vperm.slane %v258, 4
    %v289 = vlaneseq
    %v290 = vshrl.u32 %v289, 7
    %292 = vset.pattern.permute.xlu0 %v290
    %293 = vperm.xlu0 %292, %v288
    %v294 = vpop.permute.xlu0 %293
    %v295 = vperm.slane %v258, 5
    %v296 = vlaneseq
    %v297 = vshrl.u32 %v296, 7
    %299 = vset.pattern.permute.xlu0 %v297
    %300 = vperm.xlu0 %299, %v295
    %v301 = vpop.permute.xlu0 %300
    %v302 = vperm.slane %v258, 6
    %v303 = vlaneseq
    %v304 = vshrl.u32 %v303, 7
    %306 = vset.pattern.permute.xlu0 %v304
    %307 = vperm.xlu0 %306, %v302
    %v308 = vpop.permute.xlu0 %307
    %v309 = vperm.slane %v258, 7
    %v310 = vlaneseq
    %v311 = vshrl.u32 %v310, 7
    %313 = vset.pattern.permute.xlu0 %v311
    %314 = vperm.xlu0 %313, %v309
    %v315 = vpop.permute.xlu0 %314
    %v324 = vadd.f32 %v236, %v266
    %v325 = vadd.f32 %v239, %v273
    %v326 = vadd.f32 %v242, %v280
    %v327 = vadd.f32 %v245, %v287
    %v328 = vadd.f32 %v248, %v294
    %v329 = vadd.f32 %v251, %v301
    %v330 = vadd.f32 %v254, %v308
    %v331 = vadd.f32 %v257, %v315
    %v332 = vld [vmem:[#allocation3] sm:$0xff]
    %341 = vset.pattern.permute.xlu0 0
    %342 = vperm.xlu0 %341, %v324
    %v343 = vpop.permute.xlu0 %342
    %344 = vset.pattern.permute.xlu0 0
    %345 = vperm.xlu0 %344, %v325
    %v346 = vpop.permute.xlu0 %345
    %347 = vset.pattern.permute.xlu0 0
    %348 = vperm.xlu0 %347, %v326
    %v349 = vpop.permute.xlu0 %348
    %350 = vset.pattern.permute.xlu0 0
    %351 = vperm.xlu0 %350, %v327
    %v352 = vpop.permute.xlu0 %351
    %353 = vset.pattern.permute.xlu0 0
    %354 = vperm.xlu0 %353, %v328
    %v355 = vpop.permute.xlu0 %354
    %356 = vset.pattern.permute.xlu0 0
    %357 = vperm.xlu0 %356, %v329
    %v358 = vpop.permute.xlu0 %357
    %359 = vset.pattern.permute.xlu0 0
    %360 = vperm.xlu0 %359, %v330
    %v361 = vpop.permute.xlu0 %360
    %362 = vset.pattern.permute.xlu0 0
    %363 = vperm.xlu0 %362, %v331
    %v364 = vpop.permute.xlu0 %363
    %v365 = vlaneseq
    %v366 = vand.u32 %v365, 127
    %v367 = vperm.slane %v343, %v366
    %v368 = vperm.slane %v346, %v366
    %v369 = vperm.slane %v349, %v366
    %v370 = vperm.slane %v352, %v366
    %v371 = vperm.slane %v355, %v366
    %v372 = vperm.slane %v358, %v366
    %v373 = vperm.slane %v361, %v366
    %v374 = vperm.slane %v364, %v366
    %vm375 = vcmask 1041409
    %v376 = vsel %vm375, %v368, %v367
    %vm377 = vcmask 1042434
    %v378 = vsel %vm377, %v369, %v376
    %vm379 = vcmask 1043459
    %v380 = vsel %vm379, %v370, %v378
    %vm381 = vcmask 1044484
    %v382 = vsel %vm381, %v371, %v380
    %vm383 = vcmask 1045509
    %v384 = vsel %vm383, %v372, %v382
    %vm385 = vcmask 1046534
    %v386 = vsel %vm385, %v373, %v384
    %vm387 = vcmask 1047559
    %v388 = vsel %vm387, %v374, %v386
    %vm390 = vcmask 64512
    %v391 = vsel %vm390, %v388, -inf
    %392 = vmax.xlane.f32.xlu0 %v391
    %v393 = vpop.xlane.xlu0 %392
    %v394 = vmax.f32 %v332, %v393
    %v395 = vsub.f32 %v332, %v394
    %v396 = vmul.f32 %v395, 1.442695
    %v397 = vpow.pop %v396
    %399 = vset.pattern.permute.xlu0 0
    %400 = vperm.xlu0 %399, %v394
    %v401 = vpop.permute.xlu0 %400
    %v402 = vperm.slane %v401, 0
    %v403 = vperm.slane %v401, 1
    %v404 = vperm.slane %v401, 2
    %v405 = vperm.slane %v401, 3
    %v406 = vperm.slane %v401, 4
    %v407 = vperm.slane %v401, 5
    %v408 = vperm.slane %v401, 6
    %v409 = vperm.slane %v401, 7
    %v418 = vsub.f32 %v324, %v402
    %v419 = vsub.f32 %v325, %v403
    %v420 = vsub.f32 %v326, %v404
    %v421 = vsub.f32 %v327, %v405
    %v422 = vsub.f32 %v328, %v406
    %v423 = vsub.f32 %v329, %v407
    %v424 = vsub.f32 %v330, %v408
    %v425 = vsub.f32 %v331, %v409
    %v426 = vmul.f32 %v418, 1.442695
    %v427 = vpow.pop %v426
    %v428 = vmul.f32 %v419, 1.442695
    %v429 = vpow.pop %v428
    %v430 = vmul.f32 %v420, 1.442695
    %v431 = vpow.pop %v430
    %v432 = vmul.f32 %v421, 1.442695
    %v433 = vpow.pop %v432
    %v434 = vmul.f32 %v422, 1.442695
    %v435 = vpow.pop %v434
    %v436 = vmul.f32 %v423, 1.442695
    %v437 = vpow.pop %v436
    %v438 = vmul.f32 %v424, 1.442695
    %v439 = vpow.pop %v438
    %v440 = vmul.f32 %v425, 1.442695
    %v441 = vpow.pop %v440
    %v442 = vld [vmem:[#allocation4] sm:$0xff]
    %v443 = vmul.f32 %v397, %v442
    %452 = vset.pattern.permute.xlu0 0
    %453 = vperm.xlu0 %452, %v427
    %v454 = vpop.permute.xlu0 %453
    %455 = vset.pattern.permute.xlu0 0
    %456 = vperm.xlu0 %455, %v429
    %v457 = vpop.permute.xlu0 %456
    %458 = vset.pattern.permute.xlu0 0
    %459 = vperm.xlu0 %458, %v431
    %v460 = vpop.permute.xlu0 %459
    %461 = vset.pattern.permute.xlu0 0
    %462 = vperm.xlu0 %461, %v433
    %v463 = vpop.permute.xlu0 %462
    %464 = vset.pattern.permute.xlu0 0
    %465 = vperm.xlu0 %464, %v435
    %v466 = vpop.permute.xlu0 %465
    %467 = vset.pattern.permute.xlu0 0
    %468 = vperm.xlu0 %467, %v437
    %v469 = vpop.permute.xlu0 %468
    %470 = vset.pattern.permute.xlu0 0
    %471 = vperm.xlu0 %470, %v439
    %v472 = vpop.permute.xlu0 %471
    %473 = vset.pattern.permute.xlu0 0
    %474 = vperm.xlu0 %473, %v441
    %v475 = vpop.permute.xlu0 %474
    %v476 = vperm.slane %v454, %v366
    %v477 = vperm.slane %v457, %v366
    %v478 = vperm.slane %v460, %v366
    %v479 = vperm.slane %v463, %v366
    %v480 = vperm.slane %v466, %v366
    %v481 = vperm.slane %v469, %v366
    %v482 = vperm.slane %v472, %v366
    %v483 = vperm.slane %v475, %v366
    %v484 = vsel %vm375, %v477, %v476
    %v485 = vsel %vm377, %v478, %v484
    %v486 = vsel %vm379, %v479, %v485
    %v487 = vsel %vm381, %v480, %v486
    %v488 = vsel %vm383, %v481, %v487
    %v489 = vsel %vm385, %v482, %v488
    %v490 = vsel %vm387, %v483, %v489
    %v492 = vsel %vm390, %v490, 0.0
    %493 = vadd.xlane.f32.xlu0 %v492
    %v494 = vpop.xlane.xlu0 %493
    %v495 = vadd.f32 %v443, %v494
    %vm496 = vcmask 7168
    %497 = vst.msk [vmem:[#allocation4] sm:$0xff] %vm496, %v495
    %v506 = vmul.f32 %v454, %v98
    %v507 = vmul.f32 %v457, %v99
    %v508 = vmul.f32 %v460, %v100
    %v509 = vmul.f32 %v463, %v101
    %v510 = vmul.f32 %v466, %v102
    %v511 = vmul.f32 %v469, %v103
    %v512 = vmul.f32 %v472, %v104
    %v513 = vmul.f32 %v475, %v105
    %v514 = vsel %vm114, %v506, 0.0
    %v515 = vrot.slane %v514, 4
    %v516 = vadd.f32 %v514, %v515
    %v517 = vrot.slane %v516, 2
    %v518 = vadd.f32 %v516, %v517
    %v519 = vrot.slane %v518, 1
    %v520 = vadd.f32 %v518, %v519
    %v521 = vsel %vm114, %v507, 0.0
    %v522 = vrot.slane %v521, 4
    %v523 = vadd.f32 %v521, %v522
    %v524 = vrot.slane %v523, 2
    %v525 = vadd.f32 %v523, %v524
    %v526 = vrot.slane %v525, 1
    %v527 = vadd.f32 %v525, %v526
    %v528 = vsel %vm114, %v508, 0.0
    %v529 = vrot.slane %v528, 4
    %v530 = vadd.f32 %v528, %v529
    %v531 = vrot.slane %v530, 2
    %v532 = vadd.f32 %v530, %v531
    %v533 = vrot.slane %v532, 1
    %v534 = vadd.f32 %v532, %v533
    %v535 = vsel %vm114, %v509, 0.0
    %v536 = vrot.slane %v535, 4
    %v537 = vadd.f32 %v535, %v536
    %v538 = vrot.slane %v537, 2
    %v539 = vadd.f32 %v537, %v538
    %v540 = vrot.slane %v539, 1
    %v541 = vadd.f32 %v539, %v540
    %v542 = vsel %vm114, %v510, 0.0
    %v543 = vrot.slane %v542, 4
    %v544 = vadd.f32 %v542, %v543
    %v545 = vrot.slane %v544, 2
    %v546 = vadd.f32 %v544, %v545
    %v547 = vrot.slane %v546, 1
    %v548 = vadd.f32 %v546, %v547
    %v549 = vsel %vm114, %v511, 0.0
    %v550 = vrot.slane %v549, 4
    %v551 = vadd.f32 %v549, %v550
    %v552 = vrot.slane %v551, 2
    %v553 = vadd.f32 %v551, %v552
    %v554 = vrot.slane %v553, 1
    %v555 = vadd.f32 %v553, %v554
    %v556 = vsel %vm114, %v512, 0.0
    %v557 = vrot.slane %v556, 4
    %v558 = vadd.f32 %v556, %v557
    %v559 = vrot.slane %v558, 2
    %v560 = vadd.f32 %v558, %v559
    %v561 = vrot.slane %v560, 1
    %v562 = vadd.f32 %v560, %v561
    %v563 = vsel %vm114, %v513, 0.0
    %v564 = vrot.slane %v563, 4
    %v565 = vadd.f32 %v563, %v564
    %v566 = vrot.slane %v565, 2
    %v567 = vadd.f32 %v565, %v566
    %v568 = vrot.slane %v567, 1
    %v569 = vadd.f32 %v567, %v568
    %v570 = vld [vmem:[#allocation5] sm:$0xff]
    %572 = vset.pattern.permute.xlu0 0
    %573 = vperm.xlu0 %572, %v397
    %v574 = vpop.permute.xlu0 %573
    %v576 = vmul.f32 %v574, %v570
    %v585 = vsel %vm375, %v527, %v520
    %v586 = vsel %vm377, %v534, %v585
    %v587 = vsel %vm379, %v541, %v586
    %v588 = vsel %vm381, %v548, %v587
    %v589 = vsel %vm383, %v555, %v588
    %v590 = vsel %vm385, %v562, %v589
    %v591 = vsel %vm387, %v569, %v590
    %v593 = vadd.f32 %v576, %v591
    %594 = vst.msk [vmem:[#allocation5] sm:$0xff] %vm114, %v593
    %595 = vst.msk [vmem:[#allocation3] sm:$0xff] %vm496, %v394
    // Predicated region
    $region42: #{tpu_custom_call.1} parent=1 // pred_check
      %p596 = pneg %p55
    $region43: #{tpu_custom_call.1} parent=1 // pred_check_branch
      %598 = sbr.rel (%p596) target = $region45
    $region44: #{tpu_custom_call.1} parent=1 // pred_region
      %v599 = vld [vmem:[#allocation4] sm:$0xff]
      %v600 = vrcp.pop %v599
      %v601 = vmul.f32 %v599, %v600
      %v602 = vsub.f32 2.0, %v601
      %v603 = vmul.f32 %v600, %v602
      %v604 = vld [vmem:[#allocation5] sm:$0xff]
      %606 = vset.pattern.permute.xlu0 0
      %607 = vperm.xlu0 %606, %v603
      %v608 = vpop.permute.xlu0 %607
      %v610 = vmul.f32 %v604, %v608
      %611 = vst.msk [vmem:[#allocation11] sm:$0xff] %vm114, %v610
    $region45: #{tpu_custom_call.1} parent=1 // pred_fallthru
      _
    // Predicated region
    $region46: #{tpu_custom_call.1} parent=1 // pred_check
      _
    $region47: #{tpu_custom_call.1} parent=1 // pred_check_branch
      %613 = sbr.rel (0) target = $region49
    $region48: #{tpu_custom_call.1} parent=1 // pred_region
      %615 = vsyncadd [#allocation8], 0
      %s617 = sshll.u32 [#allocation11], 4
      %s618 = int_to_ptr.vmem [resolvable:$true] %s617
      %s619 = sshll.u32 %s7, 4
      %s620 = int_to_ptr.hbm [resolvable:$true] %s619
      %622 = dma.vmem_to_hbm [thread:$0]  %s618, 128, %s620, [#allocation8]
    $region49: #{tpu_custom_call.1} parent=1 // pred_fallthru
      _
    // Predicated region
    $region50: #{tpu_custom_call.1} parent=1 // pred_check
      _
    $region51: #{tpu_custom_call.1} parent=1 // pred_check_branch
      %624 = sbr.rel (0) target = $region53
    $region52: #{tpu_custom_call.1} parent=1 // pred_region
      %626 = dma.done [#allocation8], 128
    $region53: #{tpu_custom_call.1} parent=1 // pred_fallthru
      _
    %627 = vsyncpa [#allocation7], 1
    %628 = vsyncpa [#allocation10], 1
    %629 = vsyncpa [#allocation8], 1

</llo_original>
